<compile_context>
chip_gen: v6e
topology: v6e:2x2x1
jax: 0.10.0
libtpu: 0.0.40
codegen_flags: <defaults>
</compile_context>

<pallas_src>
import functools
import math

import jax
import jax.numpy as jnp
import numpy as np
from jax.experimental import pallas as pl
from jax.experimental.pallas import tpu as pltpu

_LANES = 128
_SUBLANES = 8
_ROW_ALIGN = 16          # lcm of f32 (8) and bf16 (16) sublane tiling
_MAX_TILE_ROWS = 4096    # (4096,128): 2 MiB f32 + 2 x 1 MiB bf16 per buffer
_ALPHA = 1e-7


def _round_up(x, m):
    return ((x + m - 1) // m) * m


def _detect_num_cores():
    """2 TensorCores per chip on v7x; 1 on v5e/v6e (review: make it gen-dependent)."""
    try:
        dev = jax.devices()[0]
        if getattr(dev, "platform", "") != "tpu":
            return 1
        kind = str(getattr(dev, "device_kind", "")).lower()
        return 2 if "v7" in kind else 1
    except Exception:
        return 1


def _ea_loss_kernel(inp_ref, tgt_ref, crs_ref, cnt_ref, s1_ref, s2_ref, *,
                    min_depth, max_depth, rows_padded, tile_rows,
                    blocks_per_core, nblocks):
    """One (tile_rows, 128) tile of masked SILog accumulation.

    inp/crs refs: (tile_rows, 128) bf16 VMEM tiles (upcast in-kernel).
    tgt ref:      (tile_rows, 128) f32 VMEM tile (NaN-padded).
    cnt/s1/s2:    (1, 8, 128) f32 partial accumulators resident across the
                  reduction axis (one block per core).
    """
    c = pl.program_id(0)   # core-split axis ("parallel"; size 1 on 1-TC chips)
    i = pl.program_id(1)   # streaming / reduction axis ("arbitrary")

    @pl.when(i == 0)
    def _():
        cnt_ref[...] = jnp.zeros_like(cnt_ref)
        s1_ref[...] = jnp.zeros_like(s1_ref)
        s2_ref[...] = jnp.zeros_like(s2_ref)

    block_id = c * blocks_per_core + i

    # Skip all VPU/EUP work for the clamped duplicate block that appears when
    # nblocks % num_cores != 0 (only possible on the v7x 2-core split).
    @pl.when(block_id < nblocks)
    def _():
        t = tgt_ref[...]

        # Depth-range mask.  The NaN pad of the target slab fails both
        # comparisons, so in-array padding needs no extra handling regardless
        # of the user's min/max_depth.  A single row-index compare guards only
        # the OOB rows of the last partial block (stale VMEM garbage) --
        # cheaper than the old 2-iota flat-index mask.
        mask = jnp.logical_and(t > min_depth, t < max_depth)
        row = jax.lax.broadcasted_iota(jnp.int32, (tile_rows, _LANES), 0)
        mask = jnp.logical_and(mask, row < rows_padded - block_id * tile_rows)

        # 2 logs + 1 divide instead of 3 logs (EUP is the first compute slot to
        # saturate once the streams are bf16).  An approx reciprocal
        # (pl.reciprocal(..., approx=True)) is a further option if tolerance allows.
        r = 1.0 / (t + _ALPHA)
        g_c = jnp.log((crs_ref[...].astype(jnp.float32) + _ALPHA) * r)
        g_f = jnp.log((inp_ref[...].astype(jnp.float32) + _ALPHA) * r) * (g_c * g_c)
        g_f = jnp.where(mask, g_f, jnp.float32(0.0))       # select, not multiply

        def fold(x):
            # (tile_rows, 128) -> (1, 8, 128): pure vreg-wise VPU adds (no XLU).
            return jnp.sum(x.reshape(-1, _SUBLANES, _LANES), axis=0, keepdims=True)

        cnt_ref[...] += fold(mask.astype(jnp.float32))
        s1_ref[...] += fold(g_f)
        s2_ref[...] += fold(g_f * g_f)


def _resize_bilinear_align_corners(x, out_h, out_w):
    """F.interpolate(x, (out_h, out_w), mode='bilinear', align_corners=True). NCHW."""
    _, _, h, w = x.shape
    if h == out_h and w == out_w:
        return x
    ys = jnp.linspace(0.0, h - 1, out_h) if out_h > 1 else jnp.zeros((1,))
    xs = jnp.linspace(0.0, w - 1, out_w) if out_w > 1 else jnp.zeros((1,))
    y0 = jnp.floor(ys).astype(jnp.int32)
    x0 = jnp.floor(xs).astype(jnp.int32)
    y1 = jnp.minimum(y0 + 1, h - 1)
    x1 = jnp.minimum(x0 + 1, w - 1)
    wy = (ys - y0)[None, None, :, None]
    wx = (xs - x0)[None, None, None, :]
    top = x[:, :, y0, :][:, :, :, x0] * (1.0 - wx) + x[:, :, y0, :][:, :, :, x1] * wx
    bot = x[:, :, y1, :][:, :, :, x0] * (1.0 - wx) + x[:, :, y1, :][:, :, :, x1] * wx
    return top * (1.0 - wy) + bot * wy


def _as_lane_slab(x, padded_total, dtype, pad_value):
    """Flatten to (rows, 128) in `dtype`; pad (when needed) with `pad_value`.

    Padding is only emitted when total % (16*128) != 0; the cast is done before
    the pad so bf16 streams pay half the pad-copy bytes.
    TODO(synk): when a pad is needed it is a standalone read+write pass over
    the slab (worst for the un-resized target); fusing it into the producer
    would need allow_input_fusion plumbing.
    """
    flat = x.reshape(-1).astype(dtype)
    total = flat.shape[0]
    if padded_total != total:
        flat = jnp.pad(flat, (0, padded_total - total), constant_values=pad_value)
    return flat.reshape(-1, _LANES)


def ea_loss(input, target, coarse, min_depth, max_depth, beta=0.15,
            additional_mask=None, stream_dtype=jnp.bfloat16,
            num_cores=None, max_tile_rows=_MAX_TILE_ROWS):
    """Pallas implementation of EALoss.forward (additional_mask path not supported)."""
    # TODO(synk): additional_mask merge has a data-dependent fallback (compare
    # masked count vs h*w*0.001) which needs a second pass; not implemented.
    assert additional_mask is None

    _, _, h_t, w_t = target.shape
    input = _resize_bilinear_align_corners(input.astype(jnp.float32), h_t, w_t)
    coarse = _resize_bilinear_align_corners(coarse.astype(jnp.float32), h_t, w_t)
    target = target.astype(jnp.float32)

    total = int(math.prod(target.shape))
    # Pad to a multiple of 16*128 so every (partial) tile keeps f32/bf16
    # sublane alignment.  Target pad value is NaN -> rejected by the in-kernel
    # depth-range mask; input/coarse pad values are irrelevant (masked).
    padded = _round_up(total, _ROW_ALIGN * _LANES)
    rows = padded // _LANES
    tile_rows = min(max_tile_rows, rows)               # multiple of 16, <= rows
    nblocks = pl.cdiv(rows, tile_rows)
    ncores = max(1, min(num_cores if num_cores is not None else _detect_num_cores(),
                        nblocks))
    blocks_per_core = pl.cdiv(nblocks, ncores)

    inp2 = _as_lane_slab(input, padded, stream_dtype, 0.0)
    tgt2 = _as_lane_slab(target, padded, jnp.float32, float("nan"))
    crs2 = _as_lane_slab(coarse, padded, stream_dtype, 0.0)

    kern = functools.partial(
        _ea_loss_kernel,
        min_depth=float(min_depth), max_depth=float(max_depth),
        rows_padded=rows, tile_rows=tile_rows,
        blocks_per_core=blocks_per_core, nblocks=nblocks)

    def in_map(c, i):
        # Clamp so the trailing duplicate block (nblocks % ncores != 0) never
        # DMAs out of bounds; its compute is skipped in-kernel via pl.when.
        return (jnp.minimum(c * blocks_per_core + i, nblocks - 1), 0)

    tile_spec = pl.BlockSpec((tile_rows, _LANES), in_map)
    acc_spec = pl.BlockSpec((1, _SUBLANES, _LANES), lambda c, i: (c, 0, 0))
    acc_shape = jax.ShapeDtypeStruct((ncores, _SUBLANES, _LANES), jnp.float32)

    stream_bytes = jnp.dtype(stream_dtype).itemsize
    cost = pl.CostEstimate(flops=14 * total, transcendentals=3 * total,
                           bytes_accessed=(4 + 2 * stream_bytes) * total)

    cnt_p, s1_p, s2_p = pl.pallas_call(
        kern,
        out_shape=(acc_shape, acc_shape, acc_shape),
        grid_spec=pltpu.PrefetchScalarGridSpec(
            num_scalar_prefetch=0,
            grid=(ncores, blocks_per_core),
            in_specs=[tile_spec, tile_spec, tile_spec],
            out_specs=(acc_spec, acc_spec, acc_spec)),
        compiler_params=pltpu.CompilerParams(
            dimension_semantics=("parallel", "arbitrary"),
            vmem_limit_bytes=32 * 1024 * 1024),   # explicit: safe on v5e at 4096 rows
        cost_estimate=cost,
    )(inp2, tgt2, crs2)

    # Single cross-lane reduce + scalar algebra in plain JAX.  Uses float64
    # automatically when x64 is enabled (one-pass variance cancellation on very
    # large inputs); canonicalize_dtype keeps it warning-free otherwise.
    acc_dtype = jax.dtypes.canonicalize_dtype(jnp.float64)
    n = jnp.sum(cnt_p.astype(acc_dtype))
    s1 = jnp.sum(s1_p.astype(acc_dtype))
    s2 = jnp.sum(s2_p.astype(acc_dtype))
    mean = s1 / n
    var = (s2 - n * mean * mean) / (n - 1.0)           # torch.var default: ddof=1
    dg = var + beta * mean * mean
    loss = 10.0 * jnp.sqrt(dg)
    # TODO(synk): PyTorch returns `input * 0.0` (a tensor) when mask count <= 1;
    # we return scalar 0.0 in that degenerate case instead.
    return jnp.where(n > 1.0, loss, 0.0).astype(jnp.float32)


def _reference_loss(input, target, coarse, min_depth, max_depth, beta=0.15):
    """Numpy reference mirroring the PyTorch forward (coarse already resized)."""
    inp = np.asarray(input, np.float32).reshape(-1)
    tgt = np.asarray(target, np.float32).reshape(-1)
    crs = np.asarray(coarse, np.float32).reshape(-1)
    mask = (tgt > min_depth) & (tgt < max_depth)
    inp, tgt, crs = inp[mask], tgt[mask], crs[mask]
    a = np.float32(1e-7)
    g_c = np.log(crs + a) - np.log(tgt + a)
    g_f = ((np.log(inp + a) - np.log(tgt + a)) * (g_c ** 2)).astype(np.float64)
    dg = np.var(g_f, ddof=1) + beta * np.mean(g_f) ** 2
    return 10.0 * np.sqrt(dg)


def _bf16_round(x):
    """Round-trip through bf16 exactly like the kernel's streaming cast."""
    return np.asarray(jnp.asarray(x, jnp.float32).astype(jnp.bfloat16).astype(jnp.float32))


if __name__ == "__main__":
    min_depth, max_depth, beta = 0.1, 10.0, 0.15

    # --- check 1: small depth-estimation-like shapes (single block) ----------
    k1, k2, k3 = jax.random.split(jax.random.PRNGKey(0), 3)
    input_ = jax.random.uniform(k1, (2, 1, 16, 16), jnp.float32, 0.2, 9.0)
    target = jax.random.uniform(k2, (2, 1, 16, 16), jnp.float32, 0.05, 12.0)
    coarse = jax.random.uniform(k3, (2, 1, 8, 8), jnp.float32, 0.2, 9.0)

    loss = jax.block_until_ready(
        ea_loss(input_, target, coarse, min_depth, max_depth, beta))
    coarse_rs = _resize_bilinear_align_corners(coarse, 16, 16)
    ref = _reference_loss(_bf16_round(input_), target, _bf16_round(coarse_rs),
                          min_depth, max_depth, beta)
    np.testing.assert_allclose(np.asarray(loss), ref, rtol=1e-4, atol=1e-5)

    # --- check 2: multi-block grid, NaN pad tail, partial last block ---------
    k4, k5, k6 = jax.random.split(jax.random.PRNGKey(1), 3)
    input2 = jax.random.uniform(k4, (2, 1, 530, 510), jnp.float32, 0.2, 9.0)
    target2 = jax.random.uniform(k5, (2, 1, 530, 510), jnp.float32, 0.05, 12.0)
    coarse2 = jax.random.uniform(k6, (2, 1, 265, 255), jnp.float32, 0.2, 9.0)

    loss2 = jax.block_until_ready(
        ea_loss(input2, target2, coarse2, min_depth, max_depth, beta))
    coarse2_rs = _resize_bilinear_align_corners(coarse2, 530, 510)
    ref2 = _reference_loss(_bf16_round(input2), target2, _bf16_round(coarse2_rs),
                           min_depth, max_depth, beta)
    np.testing.assert_allclose(np.asarray(loss2), ref2, rtol=2e-4, atol=1e-5)

    # --- check 3: forced 2-core split with odd nblocks -> exercises the
    #     clamped duplicate block + pl.when skip on any TPU generation --------
    k7, k8, k9 = jax.random.split(jax.random.PRNGKey(2), 3)
    input3 = jax.random.uniform(k7, (2, 1, 50, 50), jnp.float32, 0.2, 9.0)
    target3 = jax.random.uniform(k8, (2, 1, 50, 50), jnp.float32, 0.05, 12.0)
    coarse3 = jax.random.uniform(k9, (2, 1, 50, 50), jnp.float32, 0.2, 9.0)

    loss3 = jax.block_until_ready(
        ea_loss(input3, target3, coarse3, min_depth, max_depth, beta,
                num_cores=2, max_tile_rows=16))
    ref3 = _reference_loss(_bf16_round(input3), target3, _bf16_round(coarse3),
                           min_depth, max_depth, beta)
    np.testing.assert_allclose(np.asarray(loss3), ref3, rtol=1e-4, atol=1e-5)

    print("KERNEL_OK")
</pallas_src>

<mosaic_0001>
module attributes {stable_mosaic.version = 11 : i64} {
  func.func @_ea_loss_kernel(%arg0: i32, %arg1: i32, %arg2: memref<16x128xbf16, #tpu.memory_space<vmem>>, %arg3: memref<16x128xf32, #tpu.memory_space<vmem>>, %arg4: memref<16x128xbf16, #tpu.memory_space<vmem>>, %arg5: memref<1x8x128xf32, #tpu.memory_space<vmem>>, %arg6: memref<1x8x128xf32, #tpu.memory_space<vmem>>, %arg7: memref<1x8x128xf32, #tpu.memory_space<vmem>>) attributes {dimension_semantics = [#tpu.dimension_semantics<parallel>, #tpu.dimension_semantics<arbitrary>], iteration_bounds = array<i64: 1, 1>, scalar_prefetch = 0 : i64, scratch_operands = 0 : i64, tpu.core_type = #tpu.core_type<tc>, window_params = [{transform_indices = @transform_0, window_bounds = array<i64: 16, 128>}, {transform_indices = @transform_1, window_bounds = array<i64: 16, 128>}, {transform_indices = @transform_2, window_bounds = array<i64: 16, 128>}, {transform_indices = @transform_3, window_bounds = array<i64: 1, 8, 128>}, {transform_indices = @transform_4, window_bounds = array<i64: 1, 8, 128>}, {transform_indices = @transform_5, window_bounds = array<i64: 1, 8, 128>}]} {
    %c0_i32 = arith.constant 0 : i32
    %0 = arith.cmpi eq, %arg1, %c0_i32 : i32
    %1 = arith.extui %0 : i1 to i32
    %c0_i32_0 = arith.constant 0 : i32
    %2 = arith.cmpi ne, %1, %c0_i32_0 : i32
    scf.if %2 {
      %cst = arith.constant 0.000000e+00 : f32
      %8 = vector.broadcast %cst : f32 to vector<1x8x128xf32>
      %c0 = arith.constant 0 : index
      %c0_3 = arith.constant 0 : index
      %c0_4 = arith.constant 0 : index
      %9 = vector.load %arg5[%c0, %c0_3, %c0_4] : memref<1x8x128xf32, #tpu.memory_space<vmem>>, vector<1x8x128xf32>
      tpu.vector_store %arg5[%c0, %c0_3, %c0_4], %8 {strides = array<i32>} : memref<1x8x128xf32, #tpu.memory_space<vmem>>, vector<1x8x128xf32>,
      %cst_5 = arith.constant 0.000000e+00 : f32
      %10 = vector.broadcast %cst_5 : f32 to vector<1x8x128xf32>
      %c0_6 = arith.constant 0 : index
      %c0_7 = arith.constant 0 : index
      %c0_8 = arith.constant 0 : index
      %11 = vector.load %arg6[%c0_6, %c0_7, %c0_8] : memref<1x8x128xf32, #tpu.memory_space<vmem>>, vector<1x8x128xf32>
      tpu.vector_store %arg6[%c0_6, %c0_7, %c0_8], %10 {strides = array<i32>} : memref<1x8x128xf32, #tpu.memory_space<vmem>>, vector<1x8x128xf32>,
      %cst_9 = arith.constant 0.000000e+00 : f32
      %12 = vector.broadcast %cst_9 : f32 to vector<1x8x128xf32>
      %c0_10 = arith.constant 0 : index
      %c0_11 = arith.constant 0 : index
      %c0_12 = arith.constant 0 : index
      %13 = vector.load %arg7[%c0_10, %c0_11, %c0_12] : memref<1x8x128xf32, #tpu.memory_space<vmem>>, vector<1x8x128xf32>
      tpu.vector_store %arg7[%c0_10, %c0_11, %c0_12], %12 {strides = array<i32>} : memref<1x8x128xf32, #tpu.memory_space<vmem>>, vector<1x8x128xf32>,
    } else {
    }
    %c1_i32 = arith.constant 1 : i32
    %3 = arith.muli %arg0, %c1_i32 : i32
    %4 = arith.addi %3, %arg1 : i32
    %c1_i32_1 = arith.constant 1 : i32
    %5 = arith.cmpi slt, %4, %c1_i32_1 : i32
    %6 = arith.extui %5 : i1 to i32
    %c0_i32_2 = arith.constant 0 : i32
    %7 = arith.cmpi ne, %6, %c0_i32_2 : i32
    scf.if %7 {
      %c0 = arith.constant 0 : index
      %c0_3 = arith.constant 0 : index
      %8 = vector.load %arg3[%c0, %c0_3] : memref<16x128xf32, #tpu.memory_space<vmem>>, vector<16x128xf32>
      %cst = arith.constant 1.000000e-01 : f32
      %9 = vector.broadcast %cst : f32 to vector<16x128xf32>
      %10 = arith.cmpf ogt, %8, %9 : vector<16x128xf32>
      %cst_4 = arith.constant 1.000000e+01 : f32
      %11 = vector.broadcast %cst_4 : f32 to vector<16x128xf32>
      %12 = arith.cmpf olt, %8, %11 : vector<16x128xf32>
      %13 = arith.andi %10, %12 : vector<16x128xi1>
      %14 = tpu.iota {dimensions = array<i32: 0>} : vector<16x128xi32>
      %c16_i32 = arith.constant 16 : i32
      %15 = arith.muli %4, %c16_i32 : i32
      %c16_i32_5 = arith.constant 16 : i32
      %16 = arith.subi %c16_i32_5, %15 : i32
      %17 = vector.broadcast %16 : i32 to vector<16x128xi32>
      %18 = arith.cmpi slt, %14, %17 : vector<16x128xi32>
      %19 = arith.andi %13, %18 : vector<16x128xi1>
      %cst_6 = arith.constant 1.000000e-07 : f32
      %20 = vector.broadcast %cst_6 : f32 to vector<16x128xf32>
      %21 = arith.addf %8, %20 : vector<16x128xf32>
      %cst_7 = arith.constant 1.000000e+00 : f32
      %22 = vector.broadcast %cst_7 : f32 to vector<16x128xf32>
      %23 = arith.divf %22, %21 : vector<16x128xf32>
      %c0_8 = arith.constant 0 : index
      %c0_9 = arith.constant 0 : index
      %24 = vector.load %arg4[%c0_8, %c0_9] : memref<16x128xbf16, #tpu.memory_space<vmem>>, vector<16x128xbf16>
      %25 = arith.extf %24 : vector<16x128xbf16> to vector<16x128xf32>
      %cst_10 = arith.constant 1.000000e-07 : f32
      %26 = vector.broadcast %cst_10 : f32 to vector<16x128xf32>
      %27 = arith.addf %25, %26 : vector<16x128xf32>
      %28 = arith.mulf %27, %23 : vector<16x128xf32>
      %29 = math.log %28 : vector<16x128xf32>
      %c0_11 = arith.constant 0 : index
      %c0_12 = arith.constant 0 : index
      %30 = vector.load %arg2[%c0_11, %c0_12] : memref<16x128xbf16, #tpu.memory_space<vmem>>, vector<16x128xbf16>
      %31 = arith.extf %30 : vector<16x128xbf16> to vector<16x128xf32>
      %cst_13 = arith.constant 1.000000e-07 : f32
      %32 = vector.broadcast %cst_13 : f32 to vector<16x128xf32>
      %33 = arith.addf %31, %32 : vector<16x128xf32>
      %34 = arith.mulf %33, %23 : vector<16x128xf32>
      %35 = math.log %34 : vector<16x128xf32>
      %36 = arith.mulf %29, %29 : vector<16x128xf32>
      %37 = arith.mulf %35, %36 : vector<16x128xf32>
      %cst_14 = arith.constant 0.000000e+00 : f32
      %38 = vector.broadcast %cst_14 : f32 to vector<16x128xf32>
      %39 = arith.select %19, %37, %38 : vector<16x128xi1>, vector<16x128xf32>
      %c0_15 = arith.constant 0 : index
      %c0_16 = arith.constant 0 : index
      %c0_17 = arith.constant 0 : index
      %40 = vector.load %arg5[%c0_15, %c0_16, %c0_17] : memref<1x8x128xf32, #tpu.memory_space<vmem>>, vector<1x8x128xf32>
      %41 = arith.extui %19 : vector<16x128xi1> to vector<16x128xi32>
      %42 = arith.sitofp %41 : vector<16x128xi32> to vector<16x128xf32>
      %43 = vector.shape_cast %42 : vector<16x128xf32> to vector<2x8x128xf32>
      %cst_18 = arith.constant dense<0.000000e+00> : vector<8x128xf32>
      %44 = vector.multi_reduction <add>, %43, %cst_18 [0] : vector<2x8x128xf32> to vector<8x128xf32>
      %45 = vector.shape_cast %44 : vector<8x128xf32> to vector<1x8x128xf32>
      %46 = arith.addf %40, %45 : vector<1x8x128xf32>
      %c0_19 = arith.constant 0 : index
      %c0_20 = arith.constant 0 : index
      %c0_21 = arith.constant 0 : index
      %47 = vector.load %arg5[%c0_19, %c0_20, %c0_21] : memref<1x8x128xf32, #tpu.memory_space<vmem>>, vector<1x8x128xf32>
      tpu.vector_store %arg5[%c0_19, %c0_20, %c0_21], %46 {strides = array<i32>} : memref<1x8x128xf32, #tpu.memory_space<vmem>>, vector<1x8x128xf32>,
      %c0_22 = arith.constant 0 : index
      %c0_23 = arith.constant 0 : index
      %c0_24 = arith.constant 0 : index
      %48 = vector.load %arg6[%c0_22, %c0_23, %c0_24] : memref<1x8x128xf32, #tpu.memory_space<vmem>>, vector<1x8x128xf32>
      %49 = vector.shape_cast %39 : vector<16x128xf32> to vector<2x8x128xf32>
      %cst_25 = arith.constant dense<0.000000e+00> : vector<8x128xf32>
      %50 = vector.multi_reduction <add>, %49, %cst_25 [0] : vector<2x8x128xf32> to vector<8x128xf32>
      %51 = vector.shape_cast %50 : vector<8x128xf32> to vector<1x8x128xf32>
      %52 = arith.addf %48, %51 : vector<1x8x128xf32>
      %c0_26 = arith.constant 0 : index
      %c0_27 = arith.constant 0 : index
      %c0_28 = arith.constant 0 : index
      %53 = vector.load %arg6[%c0_26, %c0_27, %c0_28] : memref<1x8x128xf32, #tpu.memory_space<vmem>>, vector<1x8x128xf32>
      tpu.vector_store %arg6[%c0_26, %c0_27, %c0_28], %52 {strides = array<i32>} : memref<1x8x128xf32, #tpu.memory_space<vmem>>, vector<1x8x128xf32>,
      %c0_29 = arith.constant 0 : index
      %c0_30 = arith.constant 0 : index
      %c0_31 = arith.constant 0 : index
      %54 = vector.load %arg7[%c0_29, %c0_30, %c0_31] : memref<1x8x128xf32, #tpu.memory_space<vmem>>, vector<1x8x128xf32>
      %55 = arith.mulf %39, %39 : vector<16x128xf32>
      %56 = vector.shape_cast %55 : vector<16x128xf32> to vector<2x8x128xf32>
      %cst_32 = arith.constant dense<0.000000e+00> : vector<8x128xf32>
      %57 = vector.multi_reduction <add>, %56, %cst_32 [0] : vector<2x8x128xf32> to vector<8x128xf32>
      %58 = vector.shape_cast %57 : vector<8x128xf32> to vector<1x8x128xf32>
      %59 = arith.addf %54, %58 : vector<1x8x128xf32>
      %c0_33 = arith.constant 0 : index
      %c0_34 = arith.constant 0 : index
      %c0_35 = arith.constant 0 : index
      %60 = vector.load %arg7[%c0_33, %c0_34, %c0_35] : memref<1x8x128xf32, #tpu.memory_space<vmem>>, vector<1x8x128xf32>
      tpu.vector_store %arg7[%c0_33, %c0_34, %c0_35], %59 {strides = array<i32>} : memref<1x8x128xf32, #tpu.memory_space<vmem>>, vector<1x8x128xf32>,
    } else {
    }
    return
  }
  func.func @transform_0(%arg0: i32, %arg1: i32) -> (i32, i32) {
    %c1_i32 = arith.constant 1 : i32
    %0 = arith.muli %arg0, %c1_i32 : i32
    %1 = arith.addi %0, %arg1 : i32
    %c0_i32 = arith.constant 0 : i32
    %2 = arith.minsi %1, %c0_i32 : i32
    %c0_i32_0 = arith.constant 0 : i32
    %c0_i32_1 = arith.constant 0 : i32
    return %2, %c0_i32_0 : i32, i32
  }
  func.func @transform_1(%arg0: i32, %arg1: i32) -> (i32, i32) {
    %c1_i32 = arith.constant 1 : i32
    %0 = arith.muli %arg0, %c1_i32 : i32
    %1 = arith.addi %0, %arg1 : i32
    %c0_i32 = arith.constant 0 : i32
    %2 = arith.minsi %1, %c0_i32 : i32
    %c0_i32_0 = arith.constant 0 : i32
    %c0_i32_1 = arith.constant 0 : i32
    return %2, %c0_i32_0 : i32, i32
  }
  func.func @transform_2(%arg0: i32, %arg1: i32) -> (i32, i32) {
    %c1_i32 = arith.constant 1 : i32
    %0 = arith.muli %arg0, %c1_i32 : i32
    %1 = arith.addi %0, %arg1 : i32
    %c0_i32 = arith.constant 0 : i32
    %2 = arith.minsi %1, %c0_i32 : i32
    %c0_i32_0 = arith.constant 0 : i32
    %c0_i32_1 = arith.constant 0 : i32
    return %2, %c0_i32_0 : i32, i32
  }
  func.func @transform_3(%arg0: i32, %arg1: i32) -> (i32, i32, i32) {
    %c0_i32 = arith.constant 0 : i32
    %c0_i32_0 = arith.constant 0 : i32
    %c0_i32_1 = arith.constant 0 : i32
    return %arg0, %c0_i32, %c0_i32_0 : i32, i32, i32
  }
  func.func @transform_4(%arg0: i32, %arg1: i32) -> (i32, i32, i32) {
    %c0_i32 = arith.constant 0 : i32
    %c0_i32_0 = arith.constant 0 : i32
    %c0_i32_1 = arith.constant 0 : i32
    return %arg0, %c0_i32, %c0_i32_0 : i32, i32, i32
  }
  func.func @transform_5(%arg0: i32, %arg1: i32) -> (i32, i32, i32) {
    %c0_i32 = arith.constant 0 : i32
    %c0_i32_0 = arith.constant 0 : i32
    %c0_i32_1 = arith.constant 0 : i32
    return %arg0, %c0_i32, %c0_i32_0 : i32, i32, i32
  }
}

</mosaic_0001>

<llo_original>
// kernel: tpu_custom_call.1
$region0: #{tpu_custom_call.1}
  #allocation0 [shape = 'u32[]', space=smem, size = 0x4, offset = 0x4, fixed_abs, tag = 'smem constant byte address 0x4 - core index']
  #allocation1 [shape = 'u32[144,128]{1,0:T(1,128)}', space=vmem, size = 0x12000, scoped, tag = 'internal scratch']
  %s0 = inlined_call_operand.hbm [shape: bf16[16,128], index: 0, kind: input, shape index: {}]
  %s1 = inlined_call_operand.hbm [shape: f32[16,128], index: 1, kind: input, shape index: {}]
  %s2 = inlined_call_operand.hbm [shape: bf16[16,128], index: 2, kind: input, shape index: {}]
  %s3 = inlined_call_operand.hbm [shape: f32[1,8,128], index: 3, kind: output, shape index: {0}]
  %s4 = inlined_call_operand.hbm [shape: f32[1,8,128], index: 4, kind: output, shape index: {1}]
  %s5 = inlined_call_operand.hbm [shape: f32[1,8,128], index: 5, kind: output, shape index: {2}]
  %6 = xla_tuple %s3, %s4, %s5
  %s7 = sld [smem:[#allocation0]]
  $region58: #{tpu_custom_call.1} parent=0
    _
  %s9 = ssub.s32 1, %s7
  %s10 = scalar_select 0, %s9, %s7
  $region1: #{tpu_custom_call.1} parent=0
    #allocation2 [shape = 'u8[4096]{0}', space=vmem, size = 0x1000, scoped, tag = 'input window, operand 0, single buffered']
    #allocation3 [shape = 's32[1]{0}', space=sflag, size = 0x4, scoped, tag = 'scoped memory for tpu_custom_call.1']
    #allocation4 [shape = 's32[1]{0}', space=sflag, size = 0x4, scoped, tag = 'scoped memory for tpu_custom_call.1']
    #allocation5 [shape = 'u8[8192]{0}', space=vmem, size = 0x2000, scoped, tag = 'input window, operand 1, single buffered']
    #allocation6 [shape = 's32[1]{0}', space=sflag, size = 0x4, scoped, tag = 'scoped memory for tpu_custom_call.1']
    #allocation7 [shape = 'u8[4096]{0}', space=vmem, size = 0x1000, scoped, tag = 'input window, operand 2, single buffered']
    #allocation8 [shape = 'u8[4096]{0}', space=vmem, size = 0x1000, scoped, tag = 'output window, operand 0, single buffered']
    #allocation9 [shape = 'u8[4096]{0}', space=vmem, size = 0x1000, scoped, tag = 'output window, operand 1, single buffered']
    #allocation10 [shape = 's32[1]{0}', space=sflag, size = 0x4, scoped, tag = 'scoped memory for tpu_custom_call.1']
    #allocation11 [shape = 'u8[4096]{0}', space=vmem, size = 0x1000, scoped, tag = 'output window, operand 2, single buffered']
    %11 = vsyncpa [#allocation3], 0
    %12 = vsyncpa [#allocation6], 0
    %13 = vsyncpa [#allocation4], 0
    %14 = vsyncpa [#allocation10], 0
    // Predicated region
    $region2: #{tpu_custom_call.1} parent=1 // pred_check
      _
    $region3: #{tpu_custom_call.1} parent=1 // pred_check_branch
      %16 = sbr.rel (0) target = $region5
    $region4: #{tpu_custom_call.1} parent=1 // pred_region
      %s17 = sadd.s32 0, 0
      %p18 = scmp.lt.s32.totalorder %s17, 0
      %s19 = scalar_select %p18, %s17, 0
      %s20 = smul.u32 2, %s19
      %s22 = ssub.s32 128, 128
      %23 = vsyncadd [#allocation3], %s22
      %s24 = smul.addr %s20, 64
      %s25 = scalar_lea.hbm %s0, %s24
      %s26 = sshll.u32 [#allocation2], 4
      %s27 = int_to_ptr.vmem [resolvable:$true] %s26
      %32 = dma.hbm_to_vmem [thread:$0]  %s25, 128, %s27, [#allocation3], 64, 64, 4
    $region5: #{tpu_custom_call.1} parent=1 // pred_fallthru
      _
    // Predicated region
    $region6: #{tpu_custom_call.1} parent=1 // pred_check
      _
    $region7: #{tpu_custom_call.1} parent=1 // pred_check_branch
      %34 = sbr.rel (0) target = $region9
    $region8: #{tpu_custom_call.1} parent=1 // pred_region
      %s35 = sadd.s32 0, 0
      %p36 = scmp.lt.s32.totalorder %s35, 0
      %s37 = scalar_select %p36, %s35, 0
      %s38 = smul.u32 2, %s37
      %s40 = ssub.s32 256, 256
      %41 = vsyncadd [#allocation6], %s40
      %s42 = smul.addr %s38, 128
      %s43 = scalar_lea.hbm %s1, %s42
      %s44 = sshll.u32 [#allocation5], 4
      %s45 = int_to_ptr.vmem [resolvable:$true] %s44
      %50 = dma.hbm_to_vmem [thread:$0]  %s43, 256, %s45, [#allocation6], 128, 128, 8
    $region9: #{tpu_custom_call.1} parent=1 // pred_fallthru
      _
    // Predicated region
    $region10: #{tpu_custom_call.1} parent=1 // pred_check
      _
    $region11: #{tpu_custom_call.1} parent=1 // pred_check_branch
      %52 = sbr.rel (0) target = $region13
    $region12: #{tpu_custom_call.1} parent=1 // pred_region
      %s53 = sadd.s32 0, 0
      %p54 = scmp.lt.s32.totalorder %s53, 0
      %s55 = scalar_select %p54, %s53, 0
      %s56 = smul.u32 2, %s55
      %s58 = ssub.s32 128, 128
      %59 = vsyncadd [#allocation6], %s58
      %s60 = smul.addr %s56, 64
      %s61 = scalar_lea.hbm %s2, %s60
      %s62 = sshll.u32 [#allocation7], 4
      %s63 = int_to_ptr.vmem [resolvable:$true] %s62
      %68 = dma.hbm_to_vmem [thread:$0]  %s61, 128, %s63, [#allocation6], 64, 64, 4
    $region13: #{tpu_custom_call.1} parent=1 // pred_fallthru
      _
    // Predicated region
    $region14: #{tpu_custom_call.1} parent=1 // pred_check
      _
    $region15: #{tpu_custom_call.1} parent=1 // pred_check_branch
      %70 = sbr.rel (0) target = $region17
    $region16: #{tpu_custom_call.1} parent=1 // pred_region
      %71 = dma.done [#allocation3], 128
    $region17: #{tpu_custom_call.1} parent=1 // pred_fallthru
      _
    // Predicated region
    $region18: #{tpu_custom_call.1} parent=1 // pred_check
      _
    $region19: #{tpu_custom_call.1} parent=1 // pred_check_branch
      %73 = sbr.rel (0) target = $region21
    $region20: #{tpu_custom_call.1} parent=1 // pred_region
      %74 = dma.done [#allocation6], 256
    $region21: #{tpu_custom_call.1} parent=1 // pred_fallthru
      _
    // Predicated region
    $region22: #{tpu_custom_call.1} parent=1 // pred_check
      _
    $region23: #{tpu_custom_call.1} parent=1 // pred_check_branch
      %76 = sbr.rel (0) target = $region25
    $region24: #{tpu_custom_call.1} parent=1 // pred_region
      %77 = dma.done [#allocation6], 128
    $region25: #{tpu_custom_call.1} parent=1 // pred_fallthru
      _
    %s78 = sadd.s32 0, 0
    %p79 = scmp.lt.s32.totalorder %s78, 0
    %s80 = scalar_select %p79, %s78, 0
    %s81 = smul.u32 2, %s80
    %s82 = sadd.s32 0, 0
    %p83 = scmp.lt.s32.totalorder %s82, 0
    %s84 = scalar_select %p83, %s82, 0
    %s85 = smul.u32 2, %s84
    %s86 = sadd.s32 0, 0
    %p87 = scmp.lt.s32.totalorder %s86, 0
    %s88 = scalar_select %p87, %s86, 0
    %s89 = smul.u32 2, %s88
    %p90 = scmp.eq.s32.totalorder 0, 0
    // Predicated region
    $region26: #{tpu_custom_call.1} parent=1 // pred_check
      %p91 = pneg %p90
    $region27: #{tpu_custom_call.1} parent=1 // pred_check_branch
      %93 = sbr.rel (%p91) target = $region29
    $region28: #{tpu_custom_call.1} parent=1 // pred_region
      %94 = vst [vmem:[#allocation8] sm:$0xff] 0.0
      %95 = vst [vmem:[#allocation9] sm:$0xff] 0.0
      %96 = vst [vmem:[#allocation11] sm:$0xff] 0.0
    $region29: #{tpu_custom_call.1} parent=1 // pred_fallthru
      _
    %s97 = sadd.s32 0, 0
    %p98 = scmp.lt.s32.totalorder %s97, 1
    // Predicated region
    $region30: #{tpu_custom_call.1} parent=1 // pred_check
      %p99 = pneg %p98
    $region31: #{tpu_custom_call.1} parent=1 // pred_check_branch
      %101 = sbr.rel (%p99) target = $region33
    $region32: #{tpu_custom_call.1} parent=1 // pred_region
      %v102 = vld [vmem:[#allocation5] sm:$0xff]
      %v103 = vld [vmem:[#allocation5 + $0x8] sm:$0xff]
      %vm104 = vcmp.gt.f32.partialorder %v102, 0.1
      %vm105 = vcmp.gt.f32.partialorder %v103, 0.1
      %vm106 = vcmp.lt.f32.partialorder %v102, 10.0
      %vm107 = vcmp.lt.f32.partialorder %v103, 10.0
      %vm108 = vmand %vm104, %vm106
      %vm109 = vmand %vm105, %vm107
      %v110 = vlaneseq
      %v111 = vshrl.u32 %v110, 7
      %v112 = vadd.s32 %v111, 8
      %s113 = smul.u32 %s97, 16
      %s114 = ssub.s32 16, %s113
      %v115 = vstv %s114
      %vm116 = vcmp.lt.s32.totalorder %v111, %v115
      %vm117 = vcmp.lt.s32.totalorder %v112, %v115
      %vm118 = vmand %vm108, %vm116
      %vm119 = vmand %vm109, %vm117
      %v120 = vadd.f32 %v102, 1e-07
      %v121 = vadd.f32 %v103, 1e-07
      %v122 = vrcp.pop %v120
      %v123 = vmul.f32 1.0, %v122
      %v124 = vrcp.pop %v121
      %v125 = vmul.f32 1.0, %v124
      %v126 = vld [vmem:[#allocation7] sm:$0xf]
      %v127 = vld [vmem:[#allocation7 + $0x4] sm:$0xf]
      %v128 = vunpack.c.l.bf16 %v126
      %v129 = vunpack.c.l.bf16 %v127
      %v130 = vadd.f32 %v128, 1e-07
      %v131 = vadd.f32 %v129, 1e-07
      %v132 = vmul.f32 %v130, %v123
      %v133 = vmul.f32 %v131, %v125
      %v134 = vlog2.pop %v132
      %v135 = vmul.f32 %v134, 0.6931472
      %v136 = vlog2.pop %v133
      %v137 = vmul.f32 %v136, 0.6931472
      %v138 = vld [vmem:[#allocation2] sm:$0xf]
      %v139 = vld [vmem:[#allocation2 + $0x4] sm:$0xf]
      %v140 = vunpack.c.l.bf16 %v138
      %v141 = vunpack.c.l.bf16 %v139
      %v142 = vadd.f32 %v140, 1e-07
      %v143 = vadd.f32 %v141, 1e-07
      %v144 = vmul.f32 %v142, %v123
      %v145 = vmul.f32 %v143, %v125
      %v146 = vlog2.pop %v144
      %v147 = vmul.f32 %v146, 0.6931472
      %v148 = vlog2.pop %v145
      %v149 = vmul.f32 %v148, 0.6931472
      %v150 = vmul.f32 %v135, %v135
      %v151 = vmul.f32 %v137, %v137
      %v152 = vmul.f32 %v147, %v150
      %v153 = vmul.f32 %v149, %v151
      %v154 = vsel %vm118, %v152, 0.0
      %v155 = vsel %vm119, %v153, 0.0
      %v156 = vld [vmem:[#allocation8] sm:$0xff]
      %v157 = vsel %vm118, 1, 0
      %v158 = vsel %vm119, 1, 0
      %v159 = vcvt.s32.f32 %v157
      %v160 = vcvt.s32.f32 %v158
      %v161 = vadd.f32 %v159, %v160
      %v162 = vadd.f32 %v156, %v161
      %163 = vst [vmem:[#allocation8] sm:$0xff] %v162
      %v164 = vld [vmem:[#allocation9] sm:$0xff]
      %v165 = vadd.f32 %v154, %v155
      %v166 = vadd.f32 %v164, %v165
      %167 = vst [vmem:[#allocation9] sm:$0xff] %v166
      %v168 = vld [vmem:[#allocation11] sm:$0xff]
      %v169 = vmul.f32 %v154, %v154
      %v170 = vmul.f32 %v155, %v155
      %v171 = vadd.f32 %v169, %v170
      %v172 = vadd.f32 %v168, %v171
      %173 = vst [vmem:[#allocation11] sm:$0xff] %v172
    $region33: #{tpu_custom_call.1} parent=1 // pred_fallthru
      _
    // Predicated region
    $region34: #{tpu_custom_call.1} parent=1 // pred_check
      _
    $region35: #{tpu_custom_call.1} parent=1 // pred_check_branch
      %175 = sbr.rel (0) target = $region37
    $region36: #{tpu_custom_call.1} parent=1 // pred_region
      %s177 = ssub.s32 128, 128
      %178 = vsyncadd [#allocation4], %s177
      %s180 = sshll.u32 [#allocation8], 4
      %s181 = int_to_ptr.vmem [resolvable:$true] %s180
      %183 = dma.vmem_to_hbm [thread:$0]  %s181, 128, %s3, [#allocation4]
    $region37: #{tpu_custom_call.1} parent=1 // pred_fallthru
      _
    // Predicated region
    $region38: #{tpu_custom_call.1} parent=1 // pred_check
      _
    $region39: #{tpu_custom_call.1} parent=1 // pred_check_branch
      %185 = sbr.rel (0) target = $region41
    $region40: #{tpu_custom_call.1} parent=1 // pred_region
      %s187 = ssub.s32 128, 128
      %188 = vsyncadd [#allocation10], %s187
      %s190 = sshll.u32 [#allocation9], 4
      %s191 = int_to_ptr.vmem [resolvable:$true] %s190
      %193 = dma.vmem_to_hbm [thread:$0]  %s191, 128, %s4, [#allocation10]
    $region41: #{tpu_custom_call.1} parent=1 // pred_fallthru
      _
    // Predicated region
    $region42: #{tpu_custom_call.1} parent=1 // pred_check
      _
    $region43: #{tpu_custom_call.1} parent=1 // pred_check_branch
      %195 = sbr.rel (0) target = $region45
    $region44: #{tpu_custom_call.1} parent=1 // pred_region
      %s197 = ssub.s32 128, 128
      %198 = vsyncadd [#allocation10], %s197
      %s200 = sshll.u32 [#allocation11], 4
      %s201 = int_to_ptr.vmem [resolvable:$true] %s200
      %203 = dma.vmem_to_hbm [thread:$0]  %s201, 128, %s5, [#allocation10]
    $region45: #{tpu_custom_call.1} parent=1 // pred_fallthru
      _
    // Predicated region
    $region46: #{tpu_custom_call.1} parent=1 // pred_check
      _
    $region47: #{tpu_custom_call.1} parent=1 // pred_check_branch
      %205 = sbr.rel (0) target = $region49
    $region48: #{tpu_custom_call.1} parent=1 // pred_region
      %206 = dma.done [#allocation4], 128
    $region49: #{tpu_custom_call.1} parent=1 // pred_fallthru
      _
    // Predicated region
    $region50: #{tpu_custom_call.1} parent=1 // pred_check
      _
    $region51: #{tpu_custom_call.1} parent=1 // pred_check_branch
      %208 = sbr.rel (0) target = $region53
    $region52: #{tpu_custom_call.1} parent=1 // pred_region
      %209 = dma.done [#allocation10], 128
    $region53: #{tpu_custom_call.1} parent=1 // pred_fallthru
      _
    // Predicated region
    $region54: #{tpu_custom_call.1} parent=1 // pred_check
      _
    $region55: #{tpu_custom_call.1} parent=1 // pred_check_branch
      %211 = sbr.rel (0) target = $region57
    $region56: #{tpu_custom_call.1} parent=1 // pred_region
      %212 = dma.done [#allocation10], 128
    $region57: #{tpu_custom_call.1} parent=1 // pred_fallthru
      _
    %213 = vsyncpa [#allocation3], 1
    %214 = vsyncpa [#allocation6], 1
    %215 = vsyncpa [#allocation4], 1
    %216 = vsyncpa [#allocation10], 1

</llo_original>
